<compile_context>
chip_gen: v7x
topology: tpu7x:2x2x1
jax: 0.10.0
libtpu: 0.0.40
codegen_flags: <defaults>
</compile_context>

<pallas_src>
import jax
import jax.numpy as jnp
from jax.experimental import pallas as pl
from jax.experimental.pallas import tpu as pltpu

N_LRS = 10        # number of candidate learning rates / logits
_SUBLANES = 8     # sublane alignment for the batch axis
_MAX_TB = 1024    # rows per grid block (512 KiB-class blocks not needed: 10 lanes)


def _actor_fused_kernel(x_ref, logp_ref, pmax_ref, amax_ref):
    """Per-row fused log_softmax + max softmax prob + argmax.

    x_ref: (TB, N_LRS) f32 block; classes on lanes (sub-128, Mosaic masks).
    """
    x = x_ref[...]                                            # (TB, N)
    m = jnp.max(x, axis=-1, keepdims=True)                    # (TB, 1)
    shifted = x - m
    sum_exp = jnp.sum(jnp.exp(shifted), axis=-1, keepdims=True)
    logsum = jnp.log(sum_exp)
    # log-softmax
    logp_ref[...] = shifted - logsum
    # get_best_lr_prob: max softmax prob == exp(max log_prob) == exp(-logsum).
    # Exact (no approx reciprocal); one extra EUP op in an otherwise idle slot.
    pmax_ref[...] = jnp.exp(-logsum)
    # get_best_lr: first maximal lane index (matches torch/jnp argmax ties).
    lane = jax.lax.broadcasted_iota(jnp.int32, x.shape, 1)
    cand = jnp.where(x == m, lane, x.shape[-1])
    amax_ref[...] = jnp.min(cand, axis=-1, keepdims=True)


def _fused_call(x_padded, tb):
    b_pad, n = x_padded.shape
    grid = (b_pad // tb,)
    return pl.pallas_call(
        _actor_fused_kernel,
        out_shape=(
            jax.ShapeDtypeStruct((b_pad, n), jnp.float32),   # log-probs
            jax.ShapeDtypeStruct((b_pad, 1), jnp.float32),   # max prob
            jax.ShapeDtypeStruct((b_pad, 1), jnp.int32),     # argmax index
        ),
        grid=grid,
        in_specs=[pl.BlockSpec((tb, n), lambda i: (i, 0))],
        out_specs=(
            pl.BlockSpec((tb, n), lambda i: (i, 0)),
            pl.BlockSpec((tb, 1), lambda i: (i, 0)),
            pl.BlockSpec((tb, 1), lambda i: (i, 0)),
        ),
        compiler_params=pltpu.CompilerParams(
            dimension_semantics=("parallel",)),
    )(x_padded)


def _tile_rows(b):
    """Return (padded batch, rows-per-block); both multiples of 8, block | padded."""
    b8 = pl.cdiv(b, _SUBLANES) * _SUBLANES
    if b8 <= _MAX_TB:
        return b8, b8
    b_pad = pl.cdiv(b8, _MAX_TB) * _MAX_TB
    return b_pad, _MAX_TB


@jax.jit
def actor_fused_batched(logits_batch):
    """(B, N) logits -> (log_probs (B, N), max_prob (B,), argmax (B,)), one launch."""
    b, _ = logits_batch.shape
    b_pad, tb = _tile_rows(b)
    x = logits_batch.astype(jnp.float32)
    if b_pad > b:
        # Single fusable pad with zero rows (finite => no NaN in pad compute).
        x = jnp.pad(x, ((0, b_pad - b), (0, 0)))
    logp, pmax, amax = _fused_call(x, tb)
    return logp[:b], pmax[:b, 0], amax[:b, 0]


@jax.jit
def actor_fused(logits):
    """1-D logits -> (log_probs (N,), max_prob scalar, argmax scalar)."""
    logp, pmax, amax = actor_fused_batched(logits[None, :])
    return logp[0], pmax[0], amax[0]


def actor_forward(logits):
    """Pallas equivalent of Actor.forward(): log_softmax(logits, dim=-1)."""
    return actor_fused(logits)[0]


class ActorPallas:
    """Mirror of the PyTorch Actor module (parameters only; no optimizer).

    For a lone 10-element actor, plain jax.nn.log_softmax (or fusing these 10
    elements into the sampling / PG-loss kernel) beats any pallas_call on
    launch overhead; the Pallas kernel earns its keep on the batched path.
    """

    def __init__(self):
        # nn.Parameter(torch.zeros(10)) -> deterministic zero init.
        self.logits = jnp.zeros((N_LRS,), dtype=jnp.float32)
        self.lrs = [10.0 ** (-i) for i in range(N_LRS)]
        self._cache = None  # (log_probs, max_prob, argmax) for current logits

    def set_logits(self, logits):
        self.logits = jnp.asarray(logits, dtype=jnp.float32)
        self._cache = None

    def _stats(self):
        # One fused kernel launch, shared by forward / get_best_lr / get_best_lr_prob.
        if self._cache is None:
            self._cache = actor_fused(self.logits)
        return self._cache

    def forward(self):
        return self._stats()[0]

    def get_best_lr(self):
        _, _, idx = self._stats()
        return self.lrs[int(idx)]

    def get_best_lr_prob(self):
        _, pmax, _ = self._stats()
        return float(pmax)

    def select_action(self, key):
        # TODO(synk): torch.multinomial sampling is host/JAX glue
        # (jax.random.categorical on the kernel's log-probs), not a kernel op.
        logp = self._stats()[0]
        idx = int(jax.random.categorical(key, logp))
        return self.lrs[idx], logp[idx]


if __name__ == "__main__":
    actor = ActorPallas()

    # 1) Module-faithful case: zero logits -> uniform log-probs, argmax 0, prob 0.1.
    logp0, pmax0, amax0 = jax.block_until_ready(actor_fused(actor.logits))
    assert logp0.shape == (N_LRS,)
    assert jnp.allclose(logp0, jax.nn.log_softmax(actor.logits), atol=1e-6)
    assert jnp.allclose(logp0, jnp.full((N_LRS,), -jnp.log(float(N_LRS))), atol=1e-6)
    assert abs(float(pmax0) - 1.0 / N_LRS) < 1e-5
    assert int(amax0) == 0
    assert actor.get_best_lr() == actor.lrs[0]
    assert abs(actor.get_best_lr_prob() - 1.0 / N_LRS) < 1e-5

    # 2) Non-trivial deterministic logits: reduction / argmax / exact max-prob.
    key = jax.random.PRNGKey(0)
    rand_logits = jax.random.normal(key, (N_LRS,), dtype=jnp.float32) * 3.0
    logp_r, pmax_r, amax_r = jax.block_until_ready(actor_fused(rand_logits))
    assert jnp.allclose(logp_r, jax.nn.log_softmax(rand_logits), atol=1e-5)
    assert abs(float(pmax_r) - float(jax.nn.softmax(rand_logits).max())) < 1e-5
    assert int(amax_r) == int(jnp.argmax(rand_logits))

    # 3) Batched variant (B actors / steps in one launch, gridded batch axis).
    key_b = jax.random.PRNGKey(1)
    batch = jax.random.normal(key_b, (5, N_LRS), dtype=jnp.float32) * 2.0
    logp_b, pmax_b, amax_b = jax.block_until_ready(actor_fused_batched(batch))
    assert jnp.allclose(logp_b, jax.nn.log_softmax(batch, axis=-1), atol=1e-5)
    assert jnp.allclose(pmax_b, jax.nn.softmax(batch, axis=-1).max(axis=-1), atol=1e-5)
    assert jnp.array_equal(amax_b, jnp.argmax(batch, axis=-1).astype(jnp.int32))

    print("KERNEL_OK")
</pallas_src>

<mosaic_0001>
module attributes {stable_mosaic.version = 11 : i64} {
  func.func @_actor_fused_kernel(%arg0: i32, %arg1: memref<8x10xf32, #tpu.memory_space<vmem>>, %arg2: memref<8x10xf32, #tpu.memory_space<vmem>>, %arg3: memref<8x1xf32, #tpu.memory_space<vmem>>, %arg4: memref<8x1xi32, #tpu.memory_space<vmem>>) attributes {dimension_semantics = [#tpu.dimension_semantics<parallel>], iteration_bounds = array<i64: 1>, scalar_prefetch = 0 : i64, scratch_operands = 0 : i64, tpu.core_type = #tpu.core_type<tc>, window_params = [{transform_indices = @transform_0, window_bounds = array<i64: 8, 10>}, {transform_indices = @transform_1, window_bounds = array<i64: 8, 10>}, {transform_indices = @transform_2, window_bounds = array<i64: 8, 1>}, {transform_indices = @transform_3, window_bounds = array<i64: 8, 1>}]} {
    %c0 = arith.constant 0 : index
    %c0_0 = arith.constant 0 : index
    %0 = vector.load %arg1[%c0, %c0_0] : memref<8x10xf32, #tpu.memory_space<vmem>>, vector<8x10xf32>
    %cst = arith.constant dense<0xFF800000> : vector<8xf32>
    %1 = vector.multi_reduction <maximumf>, %0, %cst [1] : vector<8x10xf32> to vector<8xf32>
    %2 = vector.shape_cast %1 : vector<8xf32> to vector<8x1xf32>
    %3 = vector.broadcast %2 : vector<8x1xf32> to vector<8x10xf32>
    %4 = arith.subf %0, %3 : vector<8x10xf32>
    %5 = math.exp %4 : vector<8x10xf32>
    %cst_1 = arith.constant dense<0.000000e+00> : vector<8xf32>
    %6 = vector.multi_reduction <add>, %5, %cst_1 [1] : vector<8x10xf32> to vector<8xf32>
    %7 = vector.shape_cast %6 : vector<8xf32> to vector<8x1xf32>
    %8 = math.log %7 : vector<8x1xf32>
    %9 = vector.broadcast %8 : vector<8x1xf32> to vector<8x10xf32>
    %10 = arith.subf %4, %9 : vector<8x10xf32>
    %c0_2 = arith.constant 0 : index
    %c0_3 = arith.constant 0 : index
    %11 = vector.load %arg2[%c0_2, %c0_3] : memref<8x10xf32, #tpu.memory_space<vmem>>, vector<8x10xf32>
    tpu.vector_store %arg2[%c0_2, %c0_3], %10 {strides = array<i32>} : memref<8x10xf32, #tpu.memory_space<vmem>>, vector<8x10xf32>,
    %cst_4 = arith.constant 0.000000e+00 : f32
    %12 = vector.broadcast %cst_4 : f32 to vector<8x1xf32>
    %13 = arith.subf %12, %8 : vector<8x1xf32>
    %14 = math.exp %13 : vector<8x1xf32>
    %c0_5 = arith.constant 0 : index
    %c0_6 = arith.constant 0 : index
    %15 = vector.load %arg3[%c0_5, %c0_6] : memref<8x1xf32, #tpu.memory_space<vmem>>, vector<8x1xf32>
    tpu.vector_store %arg3[%c0_5, %c0_6], %14 {strides = array<i32>} : memref<8x1xf32, #tpu.memory_space<vmem>>, vector<8x1xf32>,
    %16 = tpu.iota {dimensions = array<i32: 1>} : vector<8x10xi32>
    %17 = vector.broadcast %2 : vector<8x1xf32> to vector<8x10xf32>
    %18 = arith.cmpf oeq, %0, %17 : vector<8x10xf32>
    %c10_i32 = arith.constant 10 : i32
    %19 = vector.broadcast %c10_i32 : i32 to vector<8x10xi32>
    %20 = arith.select %18, %16, %19 : vector<8x10xi1>, vector<8x10xi32>
    %cst_7 = arith.constant dense<2147483647> : vector<8xi32>
    %21 = vector.multi_reduction <minsi>, %20, %cst_7 [1] : vector<8x10xi32> to vector<8xi32>
    %22 = vector.shape_cast %21 : vector<8xi32> to vector<8x1xi32>
    %c0_8 = arith.constant 0 : index
    %c0_9 = arith.constant 0 : index
    %23 = vector.load %arg4[%c0_8, %c0_9] : memref<8x1xi32, #tpu.memory_space<vmem>>, vector<8x1xi32>
    tpu.vector_store %arg4[%c0_8, %c0_9], %22 {strides = array<i32>} : memref<8x1xi32, #tpu.memory_space<vmem>>, vector<8x1xi32>,
    return
  }
  func.func @transform_0(%arg0: i32) -> (i32, i32) {
    %c0_i32 = arith.constant 0 : i32
    %c0_i32_0 = arith.constant 0 : i32
    return %arg0, %c0_i32 : i32, i32
  }
  func.func @transform_1(%arg0: i32) -> (i32, i32) {
    %c0_i32 = arith.constant 0 : i32
    %c0_i32_0 = arith.constant 0 : i32
    return %arg0, %c0_i32 : i32, i32
  }
  func.func @transform_2(%arg0: i32) -> (i32, i32) {
    %c0_i32 = arith.constant 0 : i32
    %c0_i32_0 = arith.constant 0 : i32
    return %arg0, %c0_i32 : i32, i32
  }
  func.func @transform_3(%arg0: i32) -> (i32, i32) {
    %c0_i32 = arith.constant 0 : i32
    %c0_i32_0 = arith.constant 0 : i32
    return %arg0, %c0_i32 : i32, i32
  }
}

</mosaic_0001>

<llo_original>
// kernel: actor_fused_batched.1
$region0: #{actor_fused_batched.1}
  #allocation0 [shape = 'u32[]', space=smem, size = 0x4, offset = 0x4, fixed_abs, tag = 'smem constant byte address 0x4 - core index']
  #allocation1 [shape = 'u32[144,128]{1,0:T(1,128)}', space=vmem, size = 0x12000, scoped, tag = 'internal scratch']
  %s0 = inlined_call_operand.vmem [shape: f32[8,10], index: 0, kind: input, shape index: {}]
  %s1 = inlined_call_operand.vmem [shape: f32[8,10], index: 1, kind: output, shape index: {0}]
  %s2 = inlined_call_operand.vmem [shape: f32[8,1], index: 2, kind: output, shape index: {1}]
  %s3 = inlined_call_operand.vmem [shape: s32[8,1], index: 3, kind: output, shape index: {2}]
  %4 = xla_tuple %s1, %s2, %s3
  %s5 = sld [smem:[#allocation0]]
  $region30: #{actor_fused_batched.1} parent=0
    _
  %s7 = ssub.s32 1, %s5
  %s8 = scalar_select 0, %s7, %s5
  // Predicated region
  $region2: #{actor_fused_batched.1} parent=0 // pred_check
    _
  $region3: #{actor_fused_batched.1} parent=0 // pred_check_branch
    %10 = sbr.rel (0) target = $region5
  $region4: #{actor_fused_batched.1} parent=0 // pred_region
    _
  $region5: #{actor_fused_batched.1} parent=0 // pred_fallthru
    _
  %v11 = vld [vmem:[%s0] sm:$0xff]
  %vm12 = vcmask 80896
  %v13 = vsel %vm12, %v11, -inf
  %14 = vmax.xlane.f32.xlu0 %v13
  %v15 = vpop.xlane.xlu0 %14
  %v16 = vsub.f32 %v11, %v15
  %v17 = vmul.f32 %v16, 1.442695
  %v18 = vpow.pop %v17
  %v19 = vsel %vm12, %v18, 0.0
  %20 = vadd.xlane.f32.xlu0 %v19
  %v21 = vpop.xlane.xlu0 %20
  %v22 = vlog2.pop %v21
  %v23 = vmul.f32 %v22, 0.6931472
  %v24 = vsub.f32 %v16, %v23
  %25 = vst.msk [vmem:[%s1] sm:$0xff] %vm12, %v24
  %v26 = vsub.f32 0.0, %v23
  %v27 = vmul.f32 %v26, 1.442695
  %v28 = vpow.pop %v27
  %vm29 = vcmask 7168
  %30 = vst.msk [vmem:[%s2] sm:$0xff] %vm29, %v28
  %v31 = vlaneseq
  %v32 = vand.u32 %v31, 127
  %vm33 = vcmp.eq.f32.partialorder %v11, %v15
  %v34 = vsel %vm33, %v32, 10
  %v35 = vsel %vm12, %v34, 2147483647
  %v36 = vand.u32 %v35, 65535
  %v37 = vshra.s32 %v35, 16
  %v38 = vcvt.s32.f32 %v36
  %v39 = vcvt.s32.f32 %v37
  %40 = vmin.xlane.f32.xlu0 %v39
  %v41 = vpop.xlane.xlu0 %40
  %vm42 = vcmp.eq.f32.partialorder %v39, %v41
  %v43 = vsel %vm42, %v38, inf
  %44 = vmin.xlane.f32.xlu0 %v43
  %v45 = vpop.xlane.xlu0 %44
  %v46 = vcvt.f32.s32 %v45
  %v47 = vcvt.f32.s32 %v41
  %v48 = vshll.u32 %v47, 16
  %v49 = vadd.s32 %v48, %v46
  %50 = vst.msk [vmem:[%s3] sm:$0xff] %vm29, %v49
  // Predicated region
  $region6: #{actor_fused_batched.1} parent=0 // pred_check
    _
  $region7: #{actor_fused_batched.1} parent=0 // pred_check_branch
    %52 = sbr.rel (0) target = $region9
  $region8: #{actor_fused_batched.1} parent=0 // pred_region
    _
  $region9: #{actor_fused_batched.1} parent=0 // pred_fallthru
    _
  // Predicated region
  $region10: #{actor_fused_batched.1} parent=0 // pred_check
    _
  $region11: #{actor_fused_batched.1} parent=0 // pred_check_branch
    %54 = sbr.rel (0) target = $region13
  $region12: #{actor_fused_batched.1} parent=0 // pred_region
    _
  $region13: #{actor_fused_batched.1} parent=0 // pred_fallthru
    _
  // Predicated region
  $region14: #{actor_fused_batched.1} parent=0 // pred_check
    _
  $region15: #{actor_fused_batched.1} parent=0 // pred_check_branch
    %56 = sbr.rel (0) target = $region17
  $region16: #{actor_fused_batched.1} parent=0 // pred_region
    _
  $region17: #{actor_fused_batched.1} parent=0 // pred_fallthru
    _
  // Predicated region
  $region18: #{actor_fused_batched.1} parent=0 // pred_check
    _
  $region19: #{actor_fused_batched.1} parent=0 // pred_check_branch
    %58 = sbr.rel (0) target = $region21
  $region20: #{actor_fused_batched.1} parent=0 // pred_region
    _
  $region21: #{actor_fused_batched.1} parent=0 // pred_fallthru
    _
  // Predicated region
  $region22: #{actor_fused_batched.1} parent=0 // pred_check
    _
  $region23: #{actor_fused_batched.1} parent=0 // pred_check_branch
    %60 = sbr.rel (0) target = $region25
  $region24: #{actor_fused_batched.1} parent=0 // pred_region
    _
  $region25: #{actor_fused_batched.1} parent=0 // pred_fallthru
    _
  // Predicated region
  $region26: #{actor_fused_batched.1} parent=0 // pred_check
    _
  $region27: #{actor_fused_batched.1} parent=0 // pred_check_branch
    %62 = sbr.rel (0) target = $region29
  $region28: #{actor_fused_batched.1} parent=0 // pred_region
    _
  $region29: #{actor_fused_batched.1} parent=0 // pred_fallthru
    _

</llo_original>
